<compile_context>
chip_gen: v5e
topology: v5e:2x2
jax: 0.10.0
libtpu: 0.0.40
codegen_flags: <defaults>
</compile_context>

<pallas_src>
import functools
import numpy as np
import jax
import jax.numpy as jnp
from jax.experimental import pallas as pl
from jax.experimental.pallas import tpu as pltpu


# -----------------------------------------------------------------------------
# Parameter init (matches RoPEPosionEmbedding._init_weight exactly)
# -----------------------------------------------------------------------------
def make_rope_table(num_positions: int, embedding_dim: int) -> jnp.ndarray:
    n_pos, dim = num_positions, embedding_dim
    pos = np.arange(n_pos, dtype=np.float64)[:, None]
    j = np.arange(dim, dtype=np.float64)[None, :]
    position_enc = pos / np.power(10000.0, 2.0 * (np.floor(j / 2.0)) / dim)
    sentinel = dim // 2 if dim % 2 == 0 else dim // 2 + 1
    table = np.zeros((n_pos, dim), dtype=np.float32)
    table[:, :sentinel] = np.sin(position_enc[:, 0::2]).astype(np.float32)
    table[:, sentinel:] = np.cos(position_enc[:, 1::2]).astype(np.float32)
    return jnp.asarray(table)


# -----------------------------------------------------------------------------
# Kernel bodies.  x block: (bh_tile, s_tile, D).  coef block: (3, s_tile, D).
# coef planes: [cos_full, b_even = -sin on even lanes, b_odd = +sin on odd lanes]
# (cls rows carry identity coefficients: cos=1, sin-planes=0.)
# -----------------------------------------------------------------------------
def _rotate(x, coef_ref):
    d = x.shape[-1]
    a = coef_ref[0][None, :, :]          # (1, s_t, D)  coeff of x
    b_even = coef_ref[1][None, :, :]     # (1, s_t, D)  coeff of x[j+1] (even lanes)
    b_odd = coef_ref[2][None, :, :]      # (1, s_t, D)  coeff of x[j-1] (odd lanes)
    left = pltpu.roll(x, d - 1, axis=2)   # left[..., j]  = x[..., j+1]  (XLU lane rotate)
    right = pltpu.roll(x, 1, axis=2)      # right[..., j] = x[..., j-1]
    return x * a + left * b_even + right * b_odd


def _rope_kernel_v(x_ref, coef_ref, o_ref):
    x = x_ref[...].astype(jnp.float32)
    o_ref[...] = _rotate(x, coef_ref).astype(o_ref.dtype)


def _rope_kernel_qk(x_ref, coef_ref, perm_ref, o_ref, *, cls_token: int):
    x = x_ref[...].astype(jnp.float32)               # (bh_t, s_t, D)
    rot = _rotate(x, coef_ref)
    bh_t, s_t, d = rot.shape
    # De-interleave (evens -> first half, odds -> second half) with one exact
    # MXU matmul against the constant 0/1 permutation (VMEM-resident input).
    out = jnp.dot(rot.reshape(bh_t * s_t, d), perm_ref[...],
                  precision=jax.lax.Precision.HIGHEST,
                  preferred_element_type=jnp.float32).reshape(bh_t, s_t, d)
    if cls_token > 0:
        # cls rows pass through un-rotated AND un-permuted (their coef rows are
        # identity so rot == x; undo the permutation for those rows only).
        row = (jax.lax.broadcasted_iota(jnp.int32, (bh_t, s_t, d), 1)
               + pl.program_id(0) * s_t)
        out = jnp.where(row < cls_token, x, out)
    o_ref[...] = out.astype(o_ref.dtype)


# -----------------------------------------------------------------------------
# Wrapper: one Pallas pass over x with large, lane-dense blocks.
# -----------------------------------------------------------------------------
def rope1d_forward(x, table, cls_token: int = 0, mask_index=None,
                   add: str = "qk", seq_tile: int = 512,
                   block_bytes: int = 4 * 1024 * 1024):
    """x: [B, H, S, D] (f32 or bf16).  table: [num_positions, D] sinusoidal table."""
    if add not in ("qk", "v"):
        raise ValueError(f"add must be 'qk' or 'v', got {add!r}")
    B, H, S, D = x.shape
    assert D % 2 == 0
    dh = D // 2

    # ----- positions (host-side / static, mirrors the torch module) -----
    if mask_index is not None:
        seq_len = S + len(mask_index) - cls_token
        keep = np.ones(seq_len, dtype=bool)
        keep[np.asarray(mask_index)] = False
        positions = np.arange(seq_len)[keep]
    else:
        positions = np.arange(S - cls_token)

    # ----- tiny (S, D) coefficient-table work: touches only the table, never x -----
    emb = jnp.asarray(table, jnp.float32)[jnp.asarray(positions)]        # (S', D)
    sin, cos = emb[:, :dh], emb[:, dh:]                                  # (S', D/2)
    cos_full = jnp.repeat(cos, 2, axis=1)                                # [c0,c0,c1,c1,...]
    sin_full = jnp.repeat(sin, 2, axis=1)                                # [s0,s0,s1,s1,...]
    even_mask = jnp.asarray((np.arange(D) % 2 == 0).astype(np.float32))  # (D,)
    b_even = -sin_full * even_mask                                       # [-s0, 0, -s1, 0, ...]
    b_odd = sin_full * (1.0 - even_mask)                                 # [ 0, s0,  0, s1, ...]
    a_rows = cos_full
    if cls_token > 0:  # identity rows -> kernel passes cls tokens through untouched
        zeros = jnp.zeros((cls_token, D), jnp.float32)
        a_rows = jnp.concatenate([jnp.ones((cls_token, D), jnp.float32), a_rows], axis=0)
        b_even = jnp.concatenate([zeros, b_even], axis=0)
        b_odd = jnp.concatenate([zeros, b_odd], axis=0)
    coef = jnp.stack([a_rows, b_even, b_odd], axis=0)                    # (3, S, D) f32

    # ----- constant 0/1 de-interleave permutation (built once, VMEM-resident) -----
    if add == "qk":
        perm_np = np.zeros((D, D), np.float32)
        src = np.concatenate([np.arange(0, D, 2), np.arange(1, D, 2)])   # out lane j <- rot lane src[j]
        perm_np[src, np.arange(D)] = 1.0
        perm = jnp.asarray(perm_np)

    # ----- tiling: (bh_tile, s_tile, D) blocks targeting ~block_bytes each -----
    BH = B * H
    x3 = x.reshape(BH, S, D)             # free contiguous reshape (NOT a transpose)
    itemsize = np.dtype(x.dtype).itemsize
    s_t = min(S, int(seq_tile))
    if s_t < S:                          # sublane-tile alignment when not full-extent
        align = 8 if itemsize == 4 else 16
        s_t = max(align, (s_t // align) * align)
    row_bytes = s_t * D * itemsize
    bh_t = int(max(1, min(BH, block_bytes // max(1, row_bytes))))

    coef_bytes = 3 * s_t * D * 4
    perm_bytes = D * D * 4 if add == "qk" else 0

    def _pipelined_bytes(bh):
        blk = bh * s_t * D * itemsize
        return 2 * (blk + blk) + 2 * coef_bytes + 2 * perm_bytes

    # Keep double-buffered in+out (+ coef, perm) well under v7x's 64 MiB VMEM.
    MAX_PIPE_BYTES = 28 * 1024 * 1024
    while bh_t > 1 and _pipelined_bytes(bh_t) > MAX_PIPE_BYTES:
        bh_t = (bh_t + 1) // 2
    vmem_limit = 40 * 1024 * 1024        # safe on v7x (64 MiB physical); plenty on v5e/v6e

    grid = (pl.cdiv(S, s_t), pl.cdiv(BH, bh_t))   # BH innermost -> coef block reused, no re-DMA

    in_specs = [
        pl.BlockSpec((bh_t, s_t, D), lambda s, b: (b, s, 0)),
        pl.BlockSpec((3, s_t, D), lambda s, b: (0, s, 0)),
    ]
    operands = [x3, coef]
    if add == "qk":
        in_specs.append(pl.BlockSpec((D, D), lambda s, b: (0, 0)))
        operands.append(perm)
        kernel = functools.partial(_rope_kernel_qk, cls_token=cls_token)
    else:
        kernel = _rope_kernel_v

    out = pl.pallas_call(
        kernel,
        out_shape=jax.ShapeDtypeStruct((BH, S, D), x.dtype),
        grid=grid,
        in_specs=in_specs,
        out_specs=pl.BlockSpec((bh_t, s_t, D), lambda s, b: (b, s, 0)),
        compiler_params=pltpu.CompilerParams(
            dimension_semantics=("parallel", "parallel"),
            vmem_limit_bytes=vmem_limit,
        ),
    )(*operands)
    return out.reshape(B, H, S, D)


# -----------------------------------------------------------------------------
# Pure-JAX reference (mirrors the torch forward) for correctness checks
# -----------------------------------------------------------------------------
def rope1d_reference(x, table, cls_token=0, mask_index=None, add="qk"):
    B, H, S, D = x.shape
    if mask_index is not None:
        seq_len = S + len(mask_index) - cls_token
        keep = np.ones(seq_len, dtype=bool)
        keep[np.asarray(mask_index)] = False
        positions = np.arange(seq_len)[keep]
    else:
        positions = np.arange(S - cls_token)
    emb = jnp.asarray(table, jnp.float32)[jnp.asarray(positions)][None, None, :, :]
    sin, cos = emb[..., : D // 2], emb[..., D // 2:]
    xf = x.astype(jnp.float32)
    x_no_cls = xf[:, :, cls_token:, :]
    x1, x2 = x_no_cls[..., 0::2], x_no_cls[..., 1::2]
    if add == "qk":
        out = jnp.concatenate([x1 * cos - x2 * sin, x2 * cos + x1 * sin], axis=-1)
    else:  # 'v'
        out = jnp.stack([x1 * cos - x2 * sin, x2 * cos + x1 * sin], axis=-1)
        out = out.reshape(out.shape[:-2] + (D,))
    if cls_token > 0:
        out = jnp.concatenate([xf[:, :, :cls_token, :], out], axis=2)
    return out.astype(x.dtype)


if __name__ == "__main__":
    # Small shapes consistent with the module: x = [B, H, S, D]; D=128 gives
    # lane-dense (128-wide) blocks, which is also the realistic ViT head dim.
    B, H, S, D = 2, 4, 16, 128
    key = jax.random.PRNGKey(0)
    x = jax.random.normal(key, (B, H, S, D), dtype=jnp.float32)
    table = make_rope_table(num_positions=64, embedding_dim=D)

    # 1) default 'qk' path (concat halves)
    out = jax.block_until_ready(rope1d_forward(x, table, add="qk"))
    ref = rope1d_reference(x, table, add="qk")
    np.testing.assert_allclose(np.asarray(out), np.asarray(ref), rtol=1e-5, atol=1e-5)

    # 2) 'v' path (interleaved output)
    out = jax.block_until_ready(rope1d_forward(x, table, add="v"))
    ref = rope1d_reference(x, table, add="v")
    np.testing.assert_allclose(np.asarray(out), np.asarray(ref), rtol=1e-5, atol=1e-5)

    # 3) cls token + masked positions + multiple sequence tiles
    out = jax.block_until_ready(
        rope1d_forward(x, table, cls_token=1, mask_index=[2, 5], add="qk", seq_tile=8))
    ref = rope1d_reference(x, table, cls_token=1, mask_index=[2, 5], add="qk")
    np.testing.assert_allclose(np.asarray(out), np.asarray(ref), rtol=1e-5, atol=1e-5)

    # 4) bf16 I/O (f32 math inside the kernel) — halves HBM traffic
    xb = x.astype(jnp.bfloat16)
    out = jax.block_until_ready(rope1d_forward(xb, table, add="v"))
    ref = rope1d_reference(xb, table, add="v")
    np.testing.assert_allclose(np.asarray(out.astype(jnp.float32)),
                               np.asarray(ref.astype(jnp.float32)),
                               rtol=2e-2, atol=2e-2)

    print("KERNEL_OK")
</pallas_src>

<mosaic_0001>
module attributes {stable_mosaic.version = 11 : i64} {
  func.func @_rope_kernel_qk(%arg0: i32, %arg1: i32, %arg2: memref<8x16x128xf32, #tpu.memory_space<vmem>>, %arg3: memref<3x16x128xf32, #tpu.memory_space<vmem>>, %arg4: memref<128x128xf32, #tpu.memory_space<vmem>>, %arg5: memref<8x16x128xf32, #tpu.memory_space<vmem>>) attributes {dimension_semantics = [#tpu.dimension_semantics<parallel>, #tpu.dimension_semantics<parallel>], iteration_bounds = array<i64: 1, 1>, scalar_prefetch = 0 : i64, scratch_operands = 0 : i64, tpu.core_type = #tpu.core_type<tc>, window_params = [{transform_indices = @transform_0, window_bounds = array<i64: 8, 16, 128>}, {transform_indices = @transform_1, window_bounds = array<i64: 3, 16, 128>}, {pipeline_mode = #tpu.pipeline_mode<synchronous>, transform_indices = @transform_2, window_bounds = array<i64: 128, 128>}, {transform_indices = @transform_3, window_bounds = array<i64: 8, 16, 128>}]} {
    %c0 = arith.constant 0 : index
    %c0_0 = arith.constant 0 : index
    %c0_1 = arith.constant 0 : index
    %0 = vector.load %arg2[%c0, %c0_0, %c0_1] : memref<8x16x128xf32, #tpu.memory_space<vmem>>, vector<8x16x128xf32>
    %c0_2 = arith.constant 0 : index
    %c0_3 = arith.constant 0 : index
    %c0_4 = arith.constant 0 : index
    %1 = vector.load %arg3[%c0_2, %c0_3, %c0_4] : memref<3x16x128xf32, #tpu.memory_space<vmem>>, vector<1x16x128xf32>
    %2 = vector.shape_cast %1 : vector<1x16x128xf32> to vector<16x128xf32>
    %3 = vector.shape_cast %2 : vector<16x128xf32> to vector<1x16x128xf32>
    %c1 = arith.constant 1 : index
    %c0_5 = arith.constant 0 : index
    %c0_6 = arith.constant 0 : index
    %4 = vector.load %arg3[%c1, %c0_5, %c0_6] : memref<3x16x128xf32, #tpu.memory_space<vmem>>, vector<1x16x128xf32>
    %5 = vector.shape_cast %4 : vector<1x16x128xf32> to vector<16x128xf32>
    %6 = vector.shape_cast %5 : vector<16x128xf32> to vector<1x16x128xf32>
    %c2 = arith.constant 2 : index
    %c0_7 = arith.constant 0 : index
    %c0_8 = arith.constant 0 : index
    %7 = vector.load %arg3[%c2, %c0_7, %c0_8] : memref<3x16x128xf32, #tpu.memory_space<vmem>>, vector<1x16x128xf32>
    %8 = vector.shape_cast %7 : vector<1x16x128xf32> to vector<16x128xf32>
    %9 = vector.shape_cast %8 : vector<16x128xf32> to vector<1x16x128xf32>
    %c127_i32 = arith.constant 127 : i32
    %10 = tpu.dynamic_rotate %0 by %c127_i32 dim 2 : vector<8x16x128xf32>, i32 -> vector<8x16x128xf32>
    %c1_i32 = arith.constant 1 : i32
    %11 = tpu.dynamic_rotate %0 by %c1_i32 dim 2 : vector<8x16x128xf32>, i32 -> vector<8x16x128xf32>
    %12 = vector.broadcast %3 : vector<1x16x128xf32> to vector<8x16x128xf32>
    %13 = arith.mulf %0, %12 : vector<8x16x128xf32>
    %14 = vector.broadcast %6 : vector<1x16x128xf32> to vector<8x16x128xf32>
    %15 = arith.mulf %10, %14 : vector<8x16x128xf32>
    %16 = arith.addf %13, %15 : vector<8x16x128xf32>
    %17 = vector.broadcast %9 : vector<1x16x128xf32> to vector<8x16x128xf32>
    %18 = arith.mulf %11, %17 : vector<8x16x128xf32>
    %19 = arith.addf %16, %18 : vector<8x16x128xf32>
    %20 = vector.shape_cast %19 : vector<8x16x128xf32> to vector<128x128xf32>
    %c0_9 = arith.constant 0 : index
    %c0_10 = arith.constant 0 : index
    %21 = vector.load %arg4[%c0_9, %c0_10] : memref<128x128xf32, #tpu.memory_space<vmem>>, vector<128x128xf32>
    %cst = arith.constant dense<0.000000e+00> : vector<128x128xf32>
    %22 = tpu.matmul %20, %21, %cst {dimension_numbers = #tpu.dot_dimension_numbers<[1], [0], [0], [1], [0, 0, 1, 1], [], []>, precision = #tpu.contract_precision<fp32>} : vector<128x128xf32>, vector<128x128xf32>, vector<128x128xf32> -> vector<128x128xf32>
    %23 = vector.shape_cast %22 : vector<128x128xf32> to vector<8x16x128xf32>
    %c0_11 = arith.constant 0 : index
    %c0_12 = arith.constant 0 : index
    %c0_13 = arith.constant 0 : index
    %24 = vector.load %arg5[%c0_11, %c0_12, %c0_13] : memref<8x16x128xf32, #tpu.memory_space<vmem>>, vector<8x16x128xf32>
    tpu.vector_store %arg5[%c0_11, %c0_12, %c0_13], %23 {strides = array<i32>} : memref<8x16x128xf32, #tpu.memory_space<vmem>>, vector<8x16x128xf32>,
    return
  }
  func.func @transform_0(%arg0: i32, %arg1: i32) -> (i32, i32, i32) {
    %c0_i32 = arith.constant 0 : i32
    %c0_i32_0 = arith.constant 0 : i32
    return %arg1, %arg0, %c0_i32 : i32, i32, i32
  }
  func.func @transform_1(%arg0: i32, %arg1: i32) -> (i32, i32, i32) {
    %c0_i32 = arith.constant 0 : i32
    %c0_i32_0 = arith.constant 0 : i32
    %c0_i32_1 = arith.constant 0 : i32
    return %c0_i32, %arg0, %c0_i32_0 : i32, i32, i32
  }
  func.func @transform_2(%arg0: i32, %arg1: i32) -> (i32, i32) {
    %c0_i32 = arith.constant 0 : i32
    %c0_i32_0 = arith.constant 0 : i32
    %c0_i32_1 = arith.constant 0 : i32
    return %c0_i32, %c0_i32_0 : i32, i32
  }
  func.func @transform_3(%arg0: i32, %arg1: i32) -> (i32, i32, i32) {
    %c0_i32 = arith.constant 0 : i32
    %c0_i32_0 = arith.constant 0 : i32
    return %arg1, %arg0, %c0_i32 : i32, i32, i32
  }
}

</mosaic_0001>

<llo_original>
// kernel: tpu_custom_call.1
$region0: #{tpu_custom_call.1}
  #allocation0 [shape = 'u32[]', space=smem, size = 0x4, offset = 0x4, fixed_abs, tag = 'smem constant byte address 0x4 - core index']
  #allocation1 [shape = 'u32[72,128]{1,0:T(1,128)}', space=vmem, size = 0x9000, scoped, tag = 'internal scratch']
  %s0 = inlined_call_operand.hbm [shape: f32[8,16,128], index: 0, kind: input, shape index: {}]
  %s1 = inlined_call_operand.hbm [shape: f32[3,16,128], index: 1, kind: input, shape index: {}]
  %s2 = inlined_call_operand.hbm [shape: f32[128,128], index: 2, kind: input, shape index: {}]
  %s3 = inlined_call_operand.hbm [shape: f32[8,16,128], index: 3, kind: output, shape index: {}]
  %s4 = sld [smem:[#allocation0]]
  $region34: #{tpu_custom_call.1} parent=0
    _
  %s6 = ssub.s32 1, %s4
  %s7 = scalar_select 0, %s6, %s4
  $region1: #{tpu_custom_call.1} parent=0
    #allocation2 [shape = 'u8[65536]{0}', space=vmem, size = 0x10000, scoped, tag = 'input window, operand 0, single buffered']
    #allocation3 [shape = 's32[1]{0}', space=sflag, size = 0x4, scoped, tag = 'scoped memory for tpu_custom_call.1']
    #allocation4 [shape = 's32[1]{0}', space=sflag, size = 0x4, scoped, tag = 'scoped memory for tpu_custom_call.1']
    #allocation5 [shape = 'u8[24576]{0}', space=vmem, size = 0x6000, scoped, tag = 'input window, operand 1, single buffered']
    #allocation6 [shape = 's32[1]{0}', space=sflag, size = 0x4, scoped, tag = 'scoped memory for tpu_custom_call.1']
    #allocation7 [shape = 'u8[65536]{0}', space=vmem, size = 0x10000, scoped, tag = 'input window, operand 2, single buffered']
    #allocation8 [shape = 'u8[65536]{0}', space=vmem, size = 0x10000, scoped, tag = 'output window, operand 0, single buffered']
    %8 = vsyncpa [#allocation3], 0
    %9 = vsyncpa [#allocation6], 0
    %10 = vsyncpa [#allocation4], 0
    // Predicated region
    $region2: #{tpu_custom_call.1} parent=1 // pred_check
      _
    $region3: #{tpu_custom_call.1} parent=1 // pred_check_branch
      %12 = sbr.rel (0) target = $region5
    $region4: #{tpu_custom_call.1} parent=1 // pred_region
      %14 = vsyncadd [#allocation3], 0
      %s15 = sshll.u32 %s0, 4
      %s16 = int_to_ptr.hbm [resolvable:$true] %s15
      %s17 = sshll.u32 [#allocation2], 4
      %s18 = int_to_ptr.vmem [resolvable:$true] %s17
      %23 = dma.hbm_to_vmem [thread:$0]  %s16, 2048, %s18, [#allocation3], 128, 128, 8
    $region5: #{tpu_custom_call.1} parent=1 // pred_fallthru
      _
    // Predicated region
    $region6: #{tpu_custom_call.1} parent=1 // pred_check
      _
    $region7: #{tpu_custom_call.1} parent=1 // pred_check_branch
      %25 = sbr.rel (0) target = $region9
    $region8: #{tpu_custom_call.1} parent=1 // pred_region
      %27 = vsyncadd [#allocation6], 0
      %s28 = sshll.u32 %s1, 4
      %s29 = int_to_ptr.hbm [resolvable:$true] %s28
      %s30 = sshll.u32 [#allocation5], 4
      %s31 = int_to_ptr.vmem [resolvable:$true] %s30
      %36 = dma.hbm_to_vmem [thread:$0]  %s29, 768, %s31, [#allocation6], 128, 128, 8
    $region9: #{tpu_custom_call.1} parent=1 // pred_fallthru
      _
    // Predicated region
    $region10: #{tpu_custom_call.1} parent=1 // pred_check
      _
    $region11: #{tpu_custom_call.1} parent=1 // pred_check_branch
      %38 = sbr.rel (0) target = $region13
    $region12: #{tpu_custom_call.1} parent=1 // pred_region
      %40 = vsyncadd [#allocation6], 0
      %s41 = sshll.u32 %s2, 4
      %s42 = int_to_ptr.hbm [resolvable:$true] %s41
      %s43 = sshll.u32 [#allocation7], 4
      %s44 = int_to_ptr.vmem [resolvable:$true] %s43
      %49 = dma.hbm_to_vmem [thread:$0]  %s42, 2048, %s44, [#allocation6], 128, 128, 8
    $region13: #{tpu_custom_call.1} parent=1 // pred_fallthru
      _
    // Predicated region
    $region14: #{tpu_custom_call.1} parent=1 // pred_check
      _
    $region15: #{tpu_custom_call.1} parent=1 // pred_check_branch
      %51 = sbr.rel (0) target = $region17
    $region16: #{tpu_custom_call.1} parent=1 // pred_region
      %53 = dma.done [#allocation3], 2048
    $region17: #{tpu_custom_call.1} parent=1 // pred_fallthru
      _
    // Predicated region
    $region18: #{tpu_custom_call.1} parent=1 // pred_check
      _
    $region19: #{tpu_custom_call.1} parent=1 // pred_check_branch
      %55 = sbr.rel (0) target = $region21
    $region20: #{tpu_custom_call.1} parent=1 // pred_region
      %57 = dma.done [#allocation6], 768
    $region21: #{tpu_custom_call.1} parent=1 // pred_fallthru
      _
    // Predicated region
    $region22: #{tpu_custom_call.1} parent=1 // pred_check
      _
    $region23: #{tpu_custom_call.1} parent=1 // pred_check_branch
      %59 = sbr.rel (0) target = $region25
    $region24: #{tpu_custom_call.1} parent=1 // pred_region
      %61 = dma.done [#allocation6], 2048
    $region25: #{tpu_custom_call.1} parent=1 // pred_fallthru
      _
    %v62 = vld [vmem:[#allocation2] sm:$0xff]
    %v63 = vld [vmem:[#allocation2 + $0x8] sm:$0xff]
    %v64 = vld [vmem:[#allocation2 + $0x10] sm:$0xff]
    %v65 = vld [vmem:[#allocation2 + $0x18] sm:$0xff]
    %v66 = vld [vmem:[#allocation2 + $0x20] sm:$0xff]
    %v67 = vld [vmem:[#allocation2 + $0x28] sm:$0xff]
    %v68 = vld [vmem:[#allocation2 + $0x30] sm:$0xff]
    %v69 = vld [vmem:[#allocation2 + $0x38] sm:$0xff]
    %v70 = vld [vmem:[#allocation2 + $0x40] sm:$0xff]
    %v71 = vld [vmem:[#allocation2 + $0x48] sm:$0xff]
    %v72 = vld [vmem:[#allocation2 + $0x50] sm:$0xff]
    %v73 = vld [vmem:[#allocation2 + $0x58] sm:$0xff]
    %v74 = vld [vmem:[#allocation2 + $0x60] sm:$0xff]
    %v75 = vld [vmem:[#allocation2 + $0x68] sm:$0xff]
    %v76 = vld [vmem:[#allocation2 + $0x70] sm:$0xff]
    %v77 = vld [vmem:[#allocation2 + $0x78] sm:$0xff]
    %v78 = vld [vmem:[#allocation5] sm:$0xff]
    %v79 = vld [vmem:[#allocation5 + $0x8] sm:$0xff]
    %s80 = scalar_lea.vmem [#allocation5], 16
    %v81 = vld [vmem:[%s80] sm:$0xff]
    %v82 = vld [vmem:[%s80 + $0x8] sm:$0xff]
    %s83 = scalar_lea.vmem [#allocation5], 32
    %v84 = vld [vmem:[%s83] sm:$0xff]
    %v85 = vld [vmem:[%s83 + $0x8] sm:$0xff]
    %86 = vrot.lane.b32.xlu0 %v62, 127
    %v87 = vpop.permute.xlu0 %86
    %88 = vrot.lane.b32.xlu0 %v63, 127
    %v89 = vpop.permute.xlu0 %88
    %90 = vrot.lane.b32.xlu0 %v64, 127
    %v91 = vpop.permute.xlu0 %90
    %92 = vrot.lane.b32.xlu0 %v65, 127
    %v93 = vpop.permute.xlu0 %92
    %94 = vrot.lane.b32.xlu0 %v66, 127
    %v95 = vpop.permute.xlu0 %94
    %96 = vrot.lane.b32.xlu0 %v67, 127
    %v97 = vpop.permute.xlu0 %96
    %98 = vrot.lane.b32.xlu0 %v68, 127
    %v99 = vpop.permute.xlu0 %98
    %100 = vrot.lane.b32.xlu0 %v69, 127
    %v101 = vpop.permute.xlu0 %100
    %102 = vrot.lane.b32.xlu0 %v70, 127
    %v103 = vpop.permute.xlu0 %102
    %104 = vrot.lane.b32.xlu0 %v71, 127
    %v105 = vpop.permute.xlu0 %104
    %106 = vrot.lane.b32.xlu0 %v72, 127
    %v107 = vpop.permute.xlu0 %106
    %108 = vrot.lane.b32.xlu0 %v73, 127
    %v109 = vpop.permute.xlu0 %108
    %110 = vrot.lane.b32.xlu0 %v74, 127
    %v111 = vpop.permute.xlu0 %110
    %112 = vrot.lane.b32.xlu0 %v75, 127
    %v113 = vpop.permute.xlu0 %112
    %114 = vrot.lane.b32.xlu0 %v76, 127
    %v115 = vpop.permute.xlu0 %114
    %116 = vrot.lane.b32.xlu0 %v77, 127
    %v117 = vpop.permute.xlu0 %116
    %118 = vrot.lane.b32.xlu0 %v62, 1
    %v119 = vpop.permute.xlu0 %118
    %120 = vrot.lane.b32.xlu0 %v63, 1
    %v121 = vpop.permute.xlu0 %120
    %122 = vrot.lane.b32.xlu0 %v64, 1
    %v123 = vpop.permute.xlu0 %122
    %124 = vrot.lane.b32.xlu0 %v65, 1
    %v125 = vpop.permute.xlu0 %124
    %126 = vrot.lane.b32.xlu0 %v66, 1
    %v127 = vpop.permute.xlu0 %126
    %128 = vrot.lane.b32.xlu0 %v67, 1
    %v129 = vpop.permute.xlu0 %128
    %130 = vrot.lane.b32.xlu0 %v68, 1
    %v131 = vpop.permute.xlu0 %130
    %132 = vrot.lane.b32.xlu0 %v69, 1
    %v133 = vpop.permute.xlu0 %132
    %134 = vrot.lane.b32.xlu0 %v70, 1
    %v135 = vpop.permute.xlu0 %134
    %136 = vrot.lane.b32.xlu0 %v71, 1
    %v137 = vpop.permute.xlu0 %136
    %138 = vrot.lane.b32.xlu0 %v72, 1
    %v139 = vpop.permute.xlu0 %138
    %140 = vrot.lane.b32.xlu0 %v73, 1
    %v141 = vpop.permute.xlu0 %140
    %142 = vrot.lane.b32.xlu0 %v74, 1
    %v143 = vpop.permute.xlu0 %142
    %144 = vrot.lane.b32.xlu0 %v75, 1
    %v145 = vpop.permute.xlu0 %144
    %146 = vrot.lane.b32.xlu0 %v76, 1
    %v147 = vpop.permute.xlu0 %146
    %148 = vrot.lane.b32.xlu0 %v77, 1
    %v149 = vpop.permute.xlu0 %148
    %v150 = vmul.f32 %v62, %v78
    %v151 = vmul.f32 %v63, %v79
    %v152 = vmul.f32 %v64, %v78
    %v153 = vmul.f32 %v65, %v79
    %v154 = vmul.f32 %v66, %v78
    %v155 = vmul.f32 %v67, %v79
    %v156 = vmul.f32 %v68, %v78
    %v157 = vmul.f32 %v69, %v79
    %v158 = vmul.f32 %v70, %v78
    %v159 = vmul.f32 %v71, %v79
    %v160 = vmul.f32 %v72, %v78
    %v161 = vmul.f32 %v73, %v79
    %v162 = vmul.f32 %v74, %v78
    %v163 = vmul.f32 %v75, %v79
    %v164 = vmul.f32 %v76, %v78
    %v165 = vmul.f32 %v77, %v79
    %v166 = vmul.f32 %v87, %v81
    %v167 = vmul.f32 %v89, %v82
    %v168 = vmul.f32 %v91, %v81
    %v169 = vmul.f32 %v93, %v82
    %v170 = vmul.f32 %v95, %v81
    %v171 = vmul.f32 %v97, %v82
    %v172 = vmul.f32 %v99, %v81
    %v173 = vmul.f32 %v101, %v82
    %v174 = vmul.f32 %v103, %v81
    %v175 = vmul.f32 %v105, %v82
    %v176 = vmul.f32 %v107, %v81
    %v177 = vmul.f32 %v109, %v82
    %v178 = vmul.f32 %v111, %v81
    %v179 = vmul.f32 %v113, %v82
    %v180 = vmul.f32 %v115, %v81
    %v181 = vmul.f32 %v117, %v82
    %v182 = vadd.f32 %v150, %v166
    %v183 = vadd.f32 %v151, %v167
    %v184 = vadd.f32 %v152, %v168
    %v185 = vadd.f32 %v153, %v169
    %v186 = vadd.f32 %v154, %v170
    %v187 = vadd.f32 %v155, %v171
    %v188 = vadd.f32 %v156, %v172
    %v189 = vadd.f32 %v157, %v173
    %v190 = vadd.f32 %v158, %v174
    %v191 = vadd.f32 %v159, %v175
    %v192 = vadd.f32 %v160, %v176
    %v193 = vadd.f32 %v161, %v177
    %v194 = vadd.f32 %v162, %v178
    %v195 = vadd.f32 %v163, %v179
    %v196 = vadd.f32 %v164, %v180
    %v197 = vadd.f32 %v165, %v181
    %v198 = vmul.f32 %v119, %v84
    %v199 = vmul.f32 %v121, %v85
    %v200 = vmul.f32 %v123, %v84
    %v201 = vmul.f32 %v125, %v85
    %v202 = vmul.f32 %v127, %v84
    %v203 = vmul.f32 %v129, %v85
    %v204 = vmul.f32 %v131, %v84
    %v205 = vmul.f32 %v133, %v85
    %v206 = vmul.f32 %v135, %v84
    %v207 = vmul.f32 %v137, %v85
    %v208 = vmul.f32 %v139, %v84
    %v209 = vmul.f32 %v141, %v85
    %v210 = vmul.f32 %v143, %v84
    %v211 = vmul.f32 %v145, %v85
    %v212 = vmul.f32 %v147, %v84
    %v213 = vmul.f32 %v149, %v85
    %v214 = vadd.f32 %v182, %v198
    %v215 = vadd.f32 %v183, %v199
    %v216 = vadd.f32 %v184, %v200
    %v217 = vadd.f32 %v185, %v201
    %v218 = vadd.f32 %v186, %v202
    %v219 = vadd.f32 %v187, %v203
    %v220 = vadd.f32 %v188, %v204
    %v221 = vadd.f32 %v189, %v205
    %v222 = vadd.f32 %v190, %v206
    %v223 = vadd.f32 %v191, %v207
    %v224 = vadd.f32 %v192, %v208
    %v225 = vadd.f32 %v193, %v209
    %v226 = vadd.f32 %v194, %v210
    %v227 = vadd.f32 %v195, %v211
    %v228 = vadd.f32 %v196, %v212
    %v229 = vadd.f32 %v197, %v213
    %v230 = vld [vmem:[#allocation7] sm:$0xff]
    %v231 = vld [vmem:[#allocation7 + $0x8] sm:$0xff]
    %v232 = vld [vmem:[#allocation7 + $0x10] sm:$0xff]
    %v233 = vld [vmem:[#allocation7 + $0x18] sm:$0xff]
    %v234 = vld [vmem:[#allocation7 + $0x20] sm:$0xff]
    %v235 = vld [vmem:[#allocation7 + $0x28] sm:$0xff]
    %v236 = vld [vmem:[#allocation7 + $0x30] sm:$0xff]
    %v237 = vld [vmem:[#allocation7 + $0x38] sm:$0xff]
    %v238 = vld [vmem:[#allocation7 + $0x40] sm:$0xff]
    %v239 = vld [vmem:[#allocation7 + $0x48] sm:$0xff]
    %v240 = vld [vmem:[#allocation7 + $0x50] sm:$0xff]
    %v241 = vld [vmem:[#allocation7 + $0x58] sm:$0xff]
    %v242 = vld [vmem:[#allocation7 + $0x60] sm:$0xff]
    %v243 = vld [vmem:[#allocation7 + $0x68] sm:$0xff]
    %v244 = vld [vmem:[#allocation7 + $0x70] sm:$0xff]
    %v245 = vld [vmem:[#allocation7 + $0x78] sm:$0xff]
    %v246 = vand.u32 %v245, 4294901760
    %247 = vmatpush.msra.mxu0 %v246
    %v248 = vand.u32 %v244, 4294901760
    %249 = vmatpush.msra.mxu0 %v248
    %v250 = vand.u32 %v243, 4294901760
    %251 = vmatpush.msra.mxu0 %v250
    %v252 = vand.u32 %v242, 4294901760
    %253 = vmatpush.msra.mxu0 %v252
    %v254 = vand.u32 %v241, 4294901760
    %255 = vmatpush.msra.mxu0 %v254
    %v256 = vand.u32 %v240, 4294901760
    %257 = vmatpush.msra.mxu0 %v256
    %v258 = vand.u32 %v239, 4294901760
    %259 = vmatpush.msra.mxu0 %v258
    %v260 = vand.u32 %v238, 4294901760
    %261 = vmatpush.msra.mxu0 %v260
    %v262 = vand.u32 %v237, 4294901760
    %263 = vmatpush.msra.mxu0 %v262
    %v264 = vand.u32 %v236, 4294901760
    %265 = vmatpush.msra.mxu0 %v264
    %v266 = vand.u32 %v235, 4294901760
    %267 = vmatpush.msra.mxu0 %v266
    %v268 = vand.u32 %v234, 4294901760
    %269 = vmatpush.msra.mxu0 %v268
    %v270 = vand.u32 %v233, 4294901760
    %271 = vmatpush.msra.mxu0 %v270
    %v272 = vand.u32 %v232, 4294901760
    %273 = vmatpush.msra.mxu0 %v272
    %v274 = vand.u32 %v231, 4294901760
    %275 = vmatpush.msra.mxu0 %v274
    %v276 = vand.u32 %v230, 4294901760
    %277 = vmatpush.msra.mxu0 %v276
    %v278 = vand.u32 %v214, 4294901760
    %v279 = vsub.f32 %v214, %v278
    %v280 = vand.u32 %v279, 4294901760
    %v281 = vsub.f32 %v279, %v280
    %v282 = vand.u32 %v281, 4294901760
    %283 = vmatmul.f32.gmra.mxu0 %v282
    %v284 = vpop.f32.mrf.mxu0
    %v285 = vadd.f32 0.0, %v284
    %v286 = vand.u32 %v215, 4294901760
    %v287 = vsub.f32 %v215, %v286
    %v288 = vand.u32 %v287, 4294901760
    %v289 = vsub.f32 %v287, %v288
    %v290 = vand.u32 %v289, 4294901760
    %291 = vmatmul.f32.gmra.mxu0 %v290
    %v292 = vpop.f32.mrf.mxu0
    %v293 = vadd.f32 0.0, %v292
    %v294 = vand.u32 %v216, 4294901760
    %v295 = vsub.f32 %v216, %v294
    %v296 = vand.u32 %v295, 4294901760
    %v297 = vsub.f32 %v295, %v296
    %v298 = vand.u32 %v297, 4294901760
    %299 = vmatmul.f32.gmra.mxu0 %v298
    %v300 = vpop.f32.mrf.mxu0
    %v301 = vadd.f32 0.0, %v300
    %v302 = vand.u32 %v217, 4294901760
    %v303 = vsub.f32 %v217, %v302
    %v304 = vand.u32 %v303, 4294901760
    %v305 = vsub.f32 %v303, %v304
    %v306 = vand.u32 %v305, 4294901760
    %307 = vmatmul.f32.gmra.mxu0 %v306
    %v308 = vpop.f32.mrf.mxu0
    %v309 = vadd.f32 0.0, %v308
    %v310 = vand.u32 %v218, 4294901760
    %v311 = vsub.f32 %v218, %v310
    %v312 = vand.u32 %v311, 4294901760
    %v313 = vsub.f32 %v311, %v312
    %v314 = vand.u32 %v313, 4294901760
    %315 = vmatmul.f32.gmra.mxu0 %v314
    %v316 = vpop.f32.mrf.mxu0
    %v317 = vadd.f32 0.0, %v316
    %v318 = vand.u32 %v219, 4294901760
    %v319 = vsub.f32 %v219, %v318
    %v320 = vand.u32 %v319, 4294901760
    %v321 = vsub.f32 %v319, %v320
    %v322 = vand.u32 %v321, 4294901760
    %323 = vmatmul.f32.gmra.mxu0 %v322
    %v324 = vpop.f32.mrf.mxu0
    %v325 = vadd.f32 0.0, %v324
    %v326 = vand.u32 %v220, 4294901760
    %v327 = vsub.f32 %v220, %v326
    %v328 = vand.u32 %v327, 4294901760
    %v329 = vsub.f32 %v327, %v328
    %v330 = vand.u32 %v329, 4294901760
    %331 = vmatmul.f32.gmra.mxu0 %v330
    %v332 = vpop.f32.mrf.mxu0
    %v333 = vadd.f32 0.0, %v332
    %v334 = vand.u32 %v221, 4294901760
    %v335 = vsub.f32 %v221, %v334
    %v336 = vand.u32 %v335, 4294901760
    %v337 = vsub.f32 %v335, %v336
    %v338 = vand.u32 %v337, 4294901760
    %339 = vmatmul.f32.gmra.mxu0 %v338
    %v340 = vpop.f32.mrf.mxu0
    %v341 = vadd.f32 0.0, %v340
    %v342 = vand.u32 %v222, 4294901760
    %v343 = vsub.f32 %v222, %v342
    %v344 = vand.u32 %v343, 4294901760
    %v345 = vsub.f32 %v343, %v344
    %v346 = vand.u32 %v345, 4294901760
    %347 = vmatmul.f32.gmra.mxu0 %v346
    %v348 = vpop.f32.mrf.mxu0
    %v349 = vadd.f32 0.0, %v348
    %v350 = vand.u32 %v223, 4294901760
    %v351 = vsub.f32 %v223, %v350
    %v352 = vand.u32 %v351, 4294901760
    %v353 = vsub.f32 %v351, %v352
    %v354 = vand.u32 %v353, 4294901760
    %355 = vmatmul.f32.gmra.mxu0 %v354
    %v356 = vpop.f32.mrf.mxu0
    %v357 = vadd.f32 0.0, %v356
    %v358 = vand.u32 %v224, 4294901760
    %v359 = vsub.f32 %v224, %v358
    %v360 = vand.u32 %v359, 4294901760
    %v361 = vsub.f32 %v359, %v360
    %v362 = vand.u32 %v361, 4294901760
    %363 = vmatmul.f32.gmra.mxu0 %v362
    %v364 = vpop.f32.mrf.mxu0
    %v365 = vadd.f32 0.0, %v364
    %v366 = vand.u32 %v225, 4294901760
    %v367 = vsub.f32 %v225, %v366
    %v368 = vand.u32 %v367, 4294901760
    %v369 = vsub.f32 %v367, %v368
    %v370 = vand.u32 %v369, 4294901760
    %371 = vmatmul.f32.gmra.mxu0 %v370
    %v372 = vpop.f32.mrf.mxu0
    %v373 = vadd.f32 0.0, %v372
    %v374 = vand.u32 %v226, 4294901760
    %v375 = vsub.f32 %v226, %v374
    %v376 = vand.u32 %v375, 4294901760
    %v377 = vsub.f32 %v375, %v376
    %v378 = vand.u32 %v377, 4294901760
    %379 = vmatmul.f32.gmra.mxu0 %v378
    %v380 = vpop.f32.mrf.mxu0
    %v381 = vadd.f32 0.0, %v380
    %v382 = vand.u32 %v227, 4294901760
    %v383 = vsub.f32 %v227, %v382
    %v384 = vand.u32 %v383, 4294901760
    %v385 = vsub.f32 %v383, %v384
    %v386 = vand.u32 %v385, 4294901760
    %387 = vmatmul.f32.gmra.mxu0 %v386
    %v388 = vpop.f32.mrf.mxu0
    %v389 = vadd.f32 0.0, %v388
    %v390 = vand.u32 %v228, 4294901760
    %v391 = vsub.f32 %v228, %v390
    %v392 = vand.u32 %v391, 4294901760
    %v393 = vsub.f32 %v391, %v392
    %v394 = vand.u32 %v393, 4294901760
    %395 = vmatmul.f32.gmra.mxu0 %v394
    %v396 = vpop.f32.mrf.mxu0
    %v397 = vadd.f32 0.0, %v396
    %v398 = vand.u32 %v229, 4294901760
    %v399 = vsub.f32 %v229, %v398
    %v400 = vand.u32 %v399, 4294901760
    %v401 = vsub.f32 %v399, %v400
    %v402 = vand.u32 %v401, 4294901760
    %403 = vmatmul.f32.gmra.mxu0 %v402
    %v404 = vpop.f32.mrf.mxu0
    %v405 = vadd.f32 0.0, %v404
    %406 = vdwg.mxu0
    %v407 = vand.u32 %v245, 4294901760
    %v408 = vsub.f32 %v245, %v407
    %v409 = vand.u32 %v408, 4294901760
    %v410 = vsub.f32 %v408, %v409
    %v411 = vand.u32 %v410, 4294901760
    %412 = vmatpush.msra.mxu0 %v411
    %v413 = vand.u32 %v244, 4294901760
    %v414 = vsub.f32 %v244, %v413
    %v415 = vand.u32 %v414, 4294901760
    %v416 = vsub.f32 %v414, %v415
    %v417 = vand.u32 %v416, 4294901760
    %418 = vmatpush.msra.mxu0 %v417
    %v419 = vand.u32 %v243, 4294901760
    %v420 = vsub.f32 %v243, %v419
    %v421 = vand.u32 %v420, 4294901760
    %v422 = vsub.f32 %v420, %v421
    %v423 = vand.u32 %v422, 4294901760
    %424 = vmatpush.msra.mxu0 %v423
    %v425 = vand.u32 %v242, 4294901760
    %v426 = vsub.f32 %v242, %v425
    %v427 = vand.u32 %v426, 4294901760
    %v428 = vsub.f32 %v426, %v427
    %v429 = vand.u32 %v428, 4294901760
    %430 = vmatpush.msra.mxu0 %v429
    %v431 = vand.u32 %v241, 4294901760
    %v432 = vsub.f32 %v241, %v431
    %v433 = vand.u32 %v432, 4294901760
    %v434 = vsub.f32 %v432, %v433
    %v435 = vand.u32 %v434, 4294901760
    %436 = vmatpush.msra.mxu0 %v435
    %v437 = vand.u32 %v240, 4294901760
    %v438 = vsub.f32 %v240, %v437
    %v439 = vand.u32 %v438, 4294901760
    %v440 = vsub.f32 %v438, %v439
    %v441 = vand.u32 %v440, 4294901760
    %442 = vmatpush.msra.mxu0 %v441
    %v443 = vand.u32 %v239, 4294901760
    %v444 = vsub.f32 %v239, %v443
    %v445 = vand.u32 %v444, 4294901760
    %v446 = vsub.f32 %v444, %v445
    %v447 = vand.u32 %v446, 4294901760
    %448 = vmatpush.msra.mxu0 %v447
    %v449 = vand.u32 %v238, 4294901760
    %v450 = vsub.f32 %v238, %v449
    %v451 = vand.u32 %v450, 4294901760
    %v452 = vsub.f32 %v450, %v451
    %v453 = vand.u32 %v452, 4294901760
    %454 = vmatpush.msra.mxu0 %v453
    %v455 = vand.u32 %v237, 4294901760
    %v456 = vsub.f32 %v237, %v455
    %v457 = vand.u32 %v456, 4294901760
    %v458 = vsub.f32 %v456, %v457
    %v459 = vand.u32 %v458, 4294901760
    %460 = vmatpush.msra.mxu0 %v459
    %v461 = vand.u32 %v236, 4294901760
    %v462 = vsub.f32 %v236, %v461
    %v463 = vand.u32 %v462, 4294901760
    %v464 = vsub.f32 %v462, %v463
    %v465 = vand.u32 %v464, 4294901760
    %466 = vmatpush.msra.mxu0 %v465
    %v467 = vand.u32 %v235, 4294901760
    %v468 = vsub.f32 %v235, %v467
    %v469 = vand.u32 %v468, 4294901760
    %v470 = vsub.f32 %v468, %v469
    %v471 = vand.u32 %v470, 4294901760
    %472 = vmatpush.msra.mxu0 %v471
    %v473 = vand.u32 %v234, 4294901760
    %v474 = vsub.f32 %v234, %v473
    %v475 = vand.u32 %v474, 4294901760
    %v476 = vsub.f32 %v474, %v475
    %v477 = vand.u32 %v476, 4294901760
    %478 = vmatpush.msra.mxu0 %v477
    %v479 = vand.u32 %v233, 4294901760
    %v480 = vsub.f32 %v233, %v479
    %v481 = vand.u32 %v480, 4294901760
    %v482 = vsub.f32 %v480, %v481
    %v483 = vand.u32 %v482, 4294901760
    %484 = vmatpush.msra.mxu0 %v483
    %v485 = vand.u32 %v232, 4294901760
    %v486 = vsub.f32 %v232, %v485
    %v487 = vand.u32 %v486, 4294901760
    %v488 = vsub.f32 %v486, %v487
    %v489 = vand.u32 %v488, 4294901760
    %490 = vmatpush.msra.mxu0 %v489
    %v491 = vand.u32 %v231, 4294901760
    %v492 = vsub.f32 %v231, %v491
    %v493 = vand.u32 %v492, 4294901760
    %v494 = vsub.f32 %v492, %v493
    %v495 = vand.u32 %v494, 4294901760
    %496 = vmatpush.msra.mxu0 %v495
    %v497 = vand.u32 %v230, 4294901760
    %v498 = vsub.f32 %v230, %v497
    %v499 = vand.u32 %v498, 4294901760
    %v500 = vsub.f32 %v498, %v499
    %v501 = vand.u32 %v500, 4294901760
    %502 = vmatpush.msra.mxu0 %v501
    %v503 = vand.u32 %v214, 4294901760
    %504 = vmatmul.f32.gmra.mxu0 %v503
    %v505 = vpop.f32.mrf.mxu0
    %v506 = vadd.f32 %v285, %v505
    %v507 = vand.u32 %v215, 4294901760
    %508 = vmatmul.f32.gmra.mxu0 %v507
    %v509 = vpop.f32.mrf.mxu0
    %v510 = vadd.f32 %v293, %v509
    %v511 = vand.u32 %v216, 4294901760
    %512 = vmatmul.f32.gmra.mxu0 %v511
    %v513 = vpop.f32.mrf.mxu0
    %v514 = vadd.f32 %v301, %v513
    %v515 = vand.u32 %v217, 4294901760
    %516 = vmatmul.f32.gmra.mxu0 %v515
    %v517 = vpop.f32.mrf.mxu0
    %v518 = vadd.f32 %v309, %v517
    %v519 = vand.u32 %v218, 4294901760
    %520 = vmatmul.f32.gmra.mxu0 %v519
    %v521 = vpop.f32.mrf.mxu0
    %v522 = vadd.f32 %v317, %v521
    %v523 = vand.u32 %v219, 4294901760
    %524 = vmatmul.f32.gmra.mxu0 %v523
    %v525 = vpop.f32.mrf.mxu0
    %v526 = vadd.f32 %v325, %v525
    %v527 = vand.u32 %v220, 4294901760
    %528 = vmatmul.f32.gmra.mxu0 %v527
    %v529 = vpop.f32.mrf.mxu0
    %v530 = vadd.f32 %v333, %v529
    %v531 = vand.u32 %v221, 4294901760
    %532 = vmatmul.f32.gmra.mxu0 %v531
    %v533 = vpop.f32.mrf.mxu0
    %v534 = vadd.f32 %v341, %v533
    %v535 = vand.u32 %v222, 4294901760
    %536 = vmatmul.f32.gmra.mxu0 %v535
    %v537 = vpop.f32.mrf.mxu0
    %v538 = vadd.f32 %v349, %v537
    %v539 = vand.u32 %v223, 4294901760
    %540 = vmatmul.f32.gmra.mxu0 %v539
    %v541 = vpop.f32.mrf.mxu0
    %v542 = vadd.f32 %v357, %v541
    %v543 = vand.u32 %v224, 4294901760
    %544 = vmatmul.f32.gmra.mxu0 %v543
    %v545 = vpop.f32.mrf.mxu0
    %v546 = vadd.f32 %v365, %v545
    %v547 = vand.u32 %v225, 4294901760
    %548 = vmatmul.f32.gmra.mxu0 %v547
    %v549 = vpop.f32.mrf.mxu0
    %v550 = vadd.f32 %v373, %v549
    %v551 = vand.u32 %v226, 4294901760
    %552 = vmatmul.f32.gmra.mxu0 %v551
    %v553 = vpop.f32.mrf.mxu0
    %v554 = vadd.f32 %v381, %v553
    %v555 = vand.u32 %v227, 4294901760
    %556 = vmatmul.f32.gmra.mxu0 %v555
    %v557 = vpop.f32.mrf.mxu0
    %v558 = vadd.f32 %v389, %v557
    %v559 = vand.u32 %v228, 4294901760
    %560 = vmatmul.f32.gmra.mxu0 %v559
    %v561 = vpop.f32.mrf.mxu0
    %v562 = vadd.f32 %v397, %v561
    %v563 = vand.u32 %v229, 4294901760
    %564 = vmatmul.f32.gmra.mxu0 %v563
    %v565 = vpop.f32.mrf.mxu0
    %v566 = vadd.f32 %v405, %v565
    %567 = vdwg.mxu0
    %v568 = vand.u32 %v245, 4294901760
    %v569 = vsub.f32 %v245, %v568
    %570 = vmatpush.msra.mxu0 %v569
    %v571 = vand.u32 %v244, 4294901760
    %v572 = vsub.f32 %v244, %v571
    %573 = vmatpush.msra.mxu0 %v572
    %v574 = vand.u32 %v243, 4294901760
    %v575 = vsub.f32 %v243, %v574
    %576 = vmatpush.msra.mxu0 %v575
    %v577 = vand.u32 %v242, 4294901760
    %v578 = vsub.f32 %v242, %v577
    %579 = vmatpush.msra.mxu0 %v578
    %v580 = vand.u32 %v241, 4294901760
    %v581 = vsub.f32 %v241, %v580
    %582 = vmatpush.msra.mxu0 %v581
    %v583 = vand.u32 %v240, 4294901760
    %v584 = vsub.f32 %v240, %v583
    %585 = vmatpush.msra.mxu0 %v584
    %v586 = vand.u32 %v239, 4294901760
    %v587 = vsub.f32 %v239, %v586
    %588 = vmatpush.msra.mxu0 %v587
    %v589 = vand.u32 %v238, 4294901760
    %v590 = vsub.f32 %v238, %v589
    %591 = vmatpush.msra.mxu0 %v590
    %v592 = vand.u32 %v237, 4294901760
    %v593 = vsub.f32 %v237, %v592
    %594 = vmatpush.msra.mxu0 %v593
    %v595 = vand.u32 %v236, 4294901760
    %v596 = vsub.f32 %v236, %v595
    %597 = vmatpush.msra.mxu0 %v596
    %v598 = vand.u32 %v235, 4294901760
    %v599 = vsub.f32 %v235, %v598
    %600 = vmatpush.msra.mxu0 %v599
    %v601 = vand.u32 %v234, 4294901760
    %v602 = vsub.f32 %v234, %v601
    %603 = vmatpush.msra.mxu0 %v602
    %v604 = vand.u32 %v233, 4294901760
    %v605 = vsub.f32 %v233, %v604
    %606 = vmatpush.msra.mxu0 %v605
    %v607 = vand.u32 %v232, 4294901760
    %v608 = vsub.f32 %v232, %v607
    %609 = vmatpush.msra.mxu0 %v608
    %v610 = vand.u32 %v231, 4294901760
    %v611 = vsub.f32 %v231, %v610
    %612 = vmatpush.msra.mxu0 %v611
    %v613 = vand.u32 %v230, 4294901760
    %v614 = vsub.f32 %v230, %v613
    %615 = vmatpush.msra.mxu0 %v614
    %v616 = vand.u32 %v214, 4294901760
    %v617 = vsub.f32 %v214, %v616
    %618 = vmatmul.f32.gmra.mxu0 %v617
    %v619 = vpop.f32.mrf.mxu0
    %v620 = vadd.f32 %v506, %v619
    %v621 = vand.u32 %v215, 4294901760
    %v622 = vsub.f32 %v215, %v621
    %623 = vmatmul.f32.gmra.mxu0 %v622
    %v624 = vpop.f32.mrf.mxu0
    %v625 = vadd.f32 %v510, %v624
    %v626 = vand.u32 %v216, 4294901760
    %v627 = vsub.f32 %v216, %v626
    %628 = vmatmul.f32.gmra.mxu0 %v627
    %v629 = vpop.f32.mrf.mxu0
    %v630 = vadd.f32 %v514, %v629
    %v631 = vand.u32 %v217, 4294901760
    %v632 = vsub.f32 %v217, %v631
    %633 = vmatmul.f32.gmra.mxu0 %v632
    %v634 = vpop.f32.mrf.mxu0
    %v635 = vadd.f32 %v518, %v634
    %v636 = vand.u32 %v218, 4294901760
    %v637 = vsub.f32 %v218, %v636
    %638 = vmatmul.f32.gmra.mxu0 %v637
    %v639 = vpop.f32.mrf.mxu0
    %v640 = vadd.f32 %v522, %v639
    %v641 = vand.u32 %v219, 4294901760
    %v642 = vsub.f32 %v219, %v641
    %643 = vmatmul.f32.gmra.mxu0 %v642
    %v644 = vpop.f32.mrf.mxu0
    %v645 = vadd.f32 %v526, %v644
    %v646 = vand.u32 %v220, 4294901760
    %v647 = vsub.f32 %v220, %v646
    %648 = vmatmul.f32.gmra.mxu0 %v647
    %v649 = vpop.f32.mrf.mxu0
    %v650 = vadd.f32 %v530, %v649
    %v651 = vand.u32 %v221, 4294901760
    %v652 = vsub.f32 %v221, %v651
    %653 = vmatmul.f32.gmra.mxu0 %v652
    %v654 = vpop.f32.mrf.mxu0
    %v655 = vadd.f32 %v534, %v654
    %v656 = vand.u32 %v222, 4294901760
    %v657 = vsub.f32 %v222, %v656
    %658 = vmatmul.f32.gmra.mxu0 %v657
    %v659 = vpop.f32.mrf.mxu0
    %v660 = vadd.f32 %v538, %v659
    %v661 = vand.u32 %v223, 4294901760
    %v662 = vsub.f32 %v223, %v661
    %663 = vmatmul.f32.gmra.mxu0 %v662
    %v664 = vpop.f32.mrf.mxu0
    %v665 = vadd.f32 %v542, %v664
    %v666 = vand.u32 %v224, 4294901760
    %v667 = vsub.f32 %v224, %v666
    %668 = vmatmul.f32.gmra.mxu0 %v667
    %v669 = vpop.f32.mrf.mxu0
    %v670 = vadd.f32 %v546, %v669
    %v671 = vand.u32 %v225, 4294901760
    %v672 = vsub.f32 %v225, %v671
    %673 = vmatmul.f32.gmra.mxu0 %v672
    %v674 = vpop.f32.mrf.mxu0
    %v675 = vadd.f32 %v550, %v674
    %v676 = vand.u32 %v226, 4294901760
    %v677 = vsub.f32 %v226, %v676
    %678 = vmatmul.f32.gmra.mxu0 %v677
    %v679 = vpop.f32.mrf.mxu0
    %v680 = vadd.f32 %v554, %v679
    %v681 = vand.u32 %v227, 4294901760
    %v682 = vsub.f32 %v227, %v681
    %683 = vmatmul.f32.gmra.mxu0 %v682
    %v684 = vpop.f32.mrf.mxu0
    %v685 = vadd.f32 %v558, %v684
    %v686 = vand.u32 %v228, 4294901760
    %v687 = vsub.f32 %v228, %v686
    %688 = vmatmul.f32.gmra.mxu0 %v687
    %v689 = vpop.f32.mrf.mxu0
    %v690 = vadd.f32 %v562, %v689
    %v691 = vand.u32 %v229, 4294901760
    %v692 = vsub.f32 %v229, %v691
    %693 = vmatmul.f32.gmra.mxu0 %v692
    %v694 = vpop.f32.mrf.mxu0
    %v695 = vadd.f32 %v566, %v694
    %696 = vdwg.mxu0
    %v697 = vand.u32 %v245, 4294901760
    %698 = vmatpush.msra.mxu0 %v697
    %v699 = vand.u32 %v244, 4294901760
    %700 = vmatpush.msra.mxu0 %v699
    %v701 = vand.u32 %v243, 4294901760
    %702 = vmatpush.msra.mxu0 %v701
    %v703 = vand.u32 %v242, 4294901760
    %704 = vmatpush.msra.mxu0 %v703
    %v705 = vand.u32 %v241, 4294901760
    %706 = vmatpush.msra.mxu0 %v705
    %v707 = vand.u32 %v240, 4294901760
    %708 = vmatpush.msra.mxu0 %v707
    %v709 = vand.u32 %v239, 4294901760
    %710 = vmatpush.msra.mxu0 %v709
    %v711 = vand.u32 %v238, 4294901760
    %712 = vmatpush.msra.mxu0 %v711
    %v713 = vand.u32 %v237, 4294901760
    %714 = vmatpush.msra.mxu0 %v713
    %v715 = vand.u32 %v236, 4294901760
    %716 = vmatpush.msra.mxu0 %v715
    %v717 = vand.u32 %v235, 4294901760
    %718 = vmatpush.msra.mxu0 %v717
    %v719 = vand.u32 %v234, 4294901760
    %720 = vmatpush.msra.mxu0 %v719
    %v721 = vand.u32 %v233, 4294901760
    %722 = vmatpush.msra.mxu0 %v721
    %v723 = vand.u32 %v232, 4294901760
    %724 = vmatpush.msra.mxu0 %v723
    %v725 = vand.u32 %v231, 4294901760
    %726 = vmatpush.msra.mxu0 %v725
    %v727 = vand.u32 %v230, 4294901760
    %728 = vmatpush.msra.mxu0 %v727
    %v729 = vand.u32 %v214, 4294901760
    %v730 = vsub.f32 %v214, %v729
    %v731 = vand.u32 %v730, 4294901760
    %732 = vmatmul.f32.gmra.mxu0 %v731
    %v733 = vpop.f32.mrf.mxu0
    %v734 = vadd.f32 %v620, %v733
    %v735 = vand.u32 %v215, 4294901760
    %v736 = vsub.f32 %v215, %v735
    %v737 = vand.u32 %v736, 4294901760
    %738 = vmatmul.f32.gmra.mxu0 %v737
    %v739 = vpop.f32.mrf.mxu0
    %v740 = vadd.f32 %v625, %v739
    %v741 = vand.u32 %v216, 4294901760
    %v742 = vsub.f32 %v216, %v741
    %v743 = vand.u32 %v742, 4294901760
    %744 = vmatmul.f32.gmra.mxu0 %v743
    %v745 = vpop.f32.mrf.mxu0
    %v746 = vadd.f32 %v630, %v745
    %v747 = vand.u32 %v217, 4294901760
    %v748 = vsub.f32 %v217, %v747
    %v749 = vand.u32 %v748, 4294901760
    %750 = vmatmul.f32.gmra.mxu0 %v749
    %v751 = vpop.f32.mrf.mxu0
    %v752 = vadd.f32 %v635, %v751
    %v753 = vand.u32 %v218, 4294901760
    %v754 = vsub.f32 %v218, %v753
    %v755 = vand.u32 %v754, 4294901760
    %756 = vmatmul.f32.gmra.mxu0 %v755
    %v757 = vpop.f32.mrf.mxu0
    %v758 = vadd.f32 %v640, %v757
    %v759 = vand.u32 %v219, 4294901760
    %v760 = vsub.f32 %v219, %v759
    %v761 = vand.u32 %v760, 4294901760
    %762 = vmatmul.f32.gmra.mxu0 %v761
    %v763 = vpop.f32.mrf.mxu0
    %v764 = vadd.f32 %v645, %v763
    %v765 = vand.u32 %v220, 4294901760
    %v766 = vsub.f32 %v220, %v765
    %v767 = vand.u32 %v766, 4294901760
    %768 = vmatmul.f32.gmra.mxu0 %v767
    %v769 = vpop.f32.mrf.mxu0
    %v770 = vadd.f32 %v650, %v769
    %v771 = vand.u32 %v221, 4294901760
    %v772 = vsub.f32 %v221, %v771
    %v773 = vand.u32 %v772, 4294901760
    %774 = vmatmul.f32.gmra.mxu0 %v773
    %v775 = vpop.f32.mrf.mxu0
    %v776 = vadd.f32 %v655, %v775
    %v777 = vand.u32 %v222, 4294901760
    %v778 = vsub.f32 %v222, %v777
    %v779 = vand.u32 %v778, 4294901760
    %780 = vmatmul.f32.gmra.mxu0 %v779
    %v781 = vpop.f32.mrf.mxu0
    %v782 = vadd.f32 %v660, %v781
    %v783 = vand.u32 %v223, 4294901760
    %v784 = vsub.f32 %v223, %v783
    %v785 = vand.u32 %v784, 4294901760
    %786 = vmatmul.f32.gmra.mxu0 %v785
    %v787 = vpop.f32.mrf.mxu0
    %v788 = vadd.f32 %v665, %v787
    %v789 = vand.u32 %v224, 4294901760
    %v790 = vsub.f32 %v224, %v789
    %v791 = vand.u32 %v790, 4294901760
    %792 = vmatmul.f32.gmra.mxu0 %v791
    %v793 = vpop.f32.mrf.mxu0
    %v794 = vadd.f32 %v670, %v793
    %v795 = vand.u32 %v225, 4294901760
    %v796 = vsub.f32 %v225, %v795
    %v797 = vand.u32 %v796, 4294901760
    %798 = vmatmul.f32.gmra.mxu0 %v797
    %v799 = vpop.f32.mrf.mxu0
    %v800 = vadd.f32 %v675, %v799
    %v801 = vand.u32 %v226, 4294901760
    %v802 = vsub.f32 %v226, %v801
    %v803 = vand.u32 %v802, 4294901760
    %804 = vmatmul.f32.gmra.mxu0 %v803
    %v805 = vpop.f32.mrf.mxu0
    %v806 = vadd.f32 %v680, %v805
    %v807 = vand.u32 %v227, 4294901760
    %v808 = vsub.f32 %v227, %v807
    %v809 = vand.u32 %v808, 4294901760
    %810 = vmatmul.f32.gmra.mxu0 %v809
    %v811 = vpop.f32.mrf.mxu0
    %v812 = vadd.f32 %v685, %v811
    %v813 = vand.u32 %v228, 4294901760
    %v814 = vsub.f32 %v228, %v813
    %v815 = vand.u32 %v814, 4294901760
    %816 = vmatmul.f32.gmra.mxu0 %v815
    %v817 = vpop.f32.mrf.mxu0
    %v818 = vadd.f32 %v690, %v817
    %v819 = vand.u32 %v229, 4294901760
    %v820 = vsub.f32 %v229, %v819
    %v821 = vand.u32 %v820, 4294901760
    %822 = vmatmul.f32.gmra.mxu0 %v821
    %v823 = vpop.f32.mrf.mxu0
    %v824 = vadd.f32 %v695, %v823
    %825 = vdwg.mxu0
    %v826 = vand.u32 %v245, 4294901760
    %v827 = vsub.f32 %v245, %v826
    %v828 = vand.u32 %v827, 4294901760
    %829 = vmatpush.msra.mxu0 %v828
    %v830 = vand.u32 %v244, 4294901760
    %v831 = vsub.f32 %v244, %v830
    %v832 = vand.u32 %v831, 4294901760
    %833 = vmatpush.msra.mxu0 %v832
    %v834 = vand.u32 %v243, 4294901760
    %v835 = vsub.f32 %v243, %v834
    %v836 = vand.u32 %v835, 4294901760
    %837 = vmatpush.msra.mxu0 %v836
    %v838 = vand.u32 %v242, 4294901760
    %v839 = vsub.f32 %v242, %v838
    %v840 = vand.u32 %v839, 4294901760
    %841 = vmatpush.msra.mxu0 %v840
    %v842 = vand.u32 %v241, 4294901760
    %v843 = vsub.f32 %v241, %v842
    %v844 = vand.u32 %v843, 4294901760
    %845 = vmatpush.msra.mxu0 %v844
    %v846 = vand.u32 %v240, 4294901760
    %v847 = vsub.f32 %v240, %v846
    %v848 = vand.u32 %v847, 4294901760
    %849 = vmatpush.msra.mxu0 %v848
    %v850 = vand.u32 %v239, 4294901760
    %v851 = vsub.f32 %v239, %v850
    %v852 = vand.u32 %v851, 4294901760
    %853 = vmatpush.msra.mxu0 %v852
    %v854 = vand.u32 %v238, 4294901760
    %v855 = vsub.f32 %v238, %v854
    %v856 = vand.u32 %v855, 4294901760
    %857 = vmatpush.msra.mxu0 %v856
    %v858 = vand.u32 %v237, 4294901760
    %v859 = vsub.f32 %v237, %v858
    %v860 = vand.u32 %v859, 4294901760
    %861 = vmatpush.msra.mxu0 %v860
    %v862 = vand.u32 %v236, 4294901760
    %v863 = vsub.f32 %v236, %v862
    %v864 = vand.u32 %v863, 4294901760
    %865 = vmatpush.msra.mxu0 %v864
    %v866 = vand.u32 %v235, 4294901760
    %v867 = vsub.f32 %v235, %v866
    %v868 = vand.u32 %v867, 4294901760
    %869 = vmatpush.msra.mxu0 %v868
    %v870 = vand.u32 %v234, 4294901760
    %v871 = vsub.f32 %v234, %v870
    %v872 = vand.u32 %v871, 4294901760
    %873 = vmatpush.msra.mxu0 %v872
    %v874 = vand.u32 %v233, 4294901760
    %v875 = vsub.f32 %v233, %v874
    %v876 = vand.u32 %v875, 4294901760
    %877 = vmatpush.msra.mxu0 %v876
    %v878 = vand.u32 %v232, 4294901760
    %v879 = vsub.f32 %v232, %v878
    %v880 = vand.u32 %v879, 4294901760
    %881 = vmatpush.msra.mxu0 %v880
    %v882 = vand.u32 %v231, 4294901760
    %v883 = vsub.f32 %v231, %v882
    %v884 = vand.u32 %v883, 4294901760
    %885 = vmatpush.msra.mxu0 %v884
    %v886 = vand.u32 %v230, 4294901760
    %v887 = vsub.f32 %v230, %v886
    %v888 = vand.u32 %v887, 4294901760
    %889 = vmatpush.msra.mxu0 %v888
    %v890 = vand.u32 %v214, 4294901760
    %891 = vmatmul.f32.gmra.mxu0 %v890
    %v892 = vpop.f32.mrf.mxu0
    %v893 = vadd.f32 %v734, %v892
    %v894 = vand.u32 %v215, 4294901760
    %895 = vmatmul.f32.gmra.mxu0 %v894
    %v896 = vpop.f32.mrf.mxu0
    %v897 = vadd.f32 %v740, %v896
    %v898 = vand.u32 %v216, 4294901760
    %899 = vmatmul.f32.gmra.mxu0 %v898
    %v900 = vpop.f32.mrf.mxu0
    %v901 = vadd.f32 %v746, %v900
    %v902 = vand.u32 %v217, 4294901760
    %903 = vmatmul.f32.gmra.mxu0 %v902
    %v904 = vpop.f32.mrf.mxu0
    %v905 = vadd.f32 %v752, %v904
    %v906 = vand.u32 %v218, 4294901760
    %907 = vmatmul.f32.gmra.mxu0 %v906
    %v908 = vpop.f32.mrf.mxu0
    %v909 = vadd.f32 %v758, %v908
    %v910 = vand.u32 %v219, 4294901760
    %911 = vmatmul.f32.gmra.mxu0 %v910
    %v912 = vpop.f32.mrf.mxu0
    %v913 = vadd.f32 %v764, %v912
    %v914 = vand.u32 %v220, 4294901760
    %915 = vmatmul.f32.gmra.mxu0 %v914
    %v916 = vpop.f32.mrf.mxu0
    %v917 = vadd.f32 %v770, %v916
    %v918 = vand.u32 %v221, 4294901760
    %919 = vmatmul.f32.gmra.mxu0 %v918
    %v920 = vpop.f32.mrf.mxu0
    %v921 = vadd.f32 %v776, %v920
    %v922 = vand.u32 %v222, 4294901760
    %923 = vmatmul.f32.gmra.mxu0 %v922
    %v924 = vpop.f32.mrf.mxu0
    %v925 = vadd.f32 %v782, %v924
    %v926 = vand.u32 %v223, 4294901760
    %927 = vmatmul.f32.gmra.mxu0 %v926
    %v928 = vpop.f32.mrf.mxu0
    %v929 = vadd.f32 %v788, %v928
    %v930 = vand.u32 %v224, 4294901760
    %931 = vmatmul.f32.gmra.mxu0 %v930
    %v932 = vpop.f32.mrf.mxu0
    %v933 = vadd.f32 %v794, %v932
    %v934 = vand.u32 %v225, 4294901760
    %935 = vmatmul.f32.gmra.mxu0 %v934
    %v936 = vpop.f32.mrf.mxu0
    %v937 = vadd.f32 %v800, %v936
    %v938 = vand.u32 %v226, 4294901760
    %939 = vmatmul.f32.gmra.mxu0 %v938
    %v940 = vpop.f32.mrf.mxu0
    %v941 = vadd.f32 %v806, %v940
    %v942 = vand.u32 %v227, 4294901760
    %943 = vmatmul.f32.gmra.mxu0 %v942
    %v944 = vpop.f32.mrf.mxu0
    %v945 = vadd.f32 %v812, %v944
    %v946 = vand.u32 %v228, 4294901760
    %947 = vmatmul.f32.gmra.mxu0 %v946
    %v948 = vpop.f32.mrf.mxu0
    %v949 = vadd.f32 %v818, %v948
    %v950 = vand.u32 %v229, 4294901760
    %951 = vmatmul.f32.gmra.mxu0 %v950
    %v952 = vpop.f32.mrf.mxu0
    %v953 = vadd.f32 %v824, %v952
    %954 = vdwg.mxu0
    %v955 = vand.u32 %v245, 4294901760
    %956 = vmatpush.msra.mxu0 %v955
    %v957 = vand.u32 %v244, 4294901760
    %958 = vmatpush.msra.mxu0 %v957
    %v959 = vand.u32 %v243, 4294901760
    %960 = vmatpush.msra.mxu0 %v959
    %v961 = vand.u32 %v242, 4294901760
    %962 = vmatpush.msra.mxu0 %v961
    %v963 = vand.u32 %v241, 4294901760
    %964 = vmatpush.msra.mxu0 %v963
    %v965 = vand.u32 %v240, 4294901760
    %966 = vmatpush.msra.mxu0 %v965
    %v967 = vand.u32 %v239, 4294901760
    %968 = vmatpush.msra.mxu0 %v967
    %v969 = vand.u32 %v238, 4294901760
    %970 = vmatpush.msra.mxu0 %v969
    %v971 = vand.u32 %v237, 4294901760
    %972 = vmatpush.msra.mxu0 %v971
    %v973 = vand.u32 %v236, 4294901760
    %974 = vmatpush.msra.mxu0 %v973
    %v975 = vand.u32 %v235, 4294901760
    %976 = vmatpush.msra.mxu0 %v975
    %v977 = vand.u32 %v234, 4294901760
    %978 = vmatpush.msra.mxu0 %v977
    %v979 = vand.u32 %v233, 4294901760
    %980 = vmatpush.msra.mxu0 %v979
    %v981 = vand.u32 %v232, 4294901760
    %982 = vmatpush.msra.mxu0 %v981
    %v983 = vand.u32 %v231, 4294901760
    %984 = vmatpush.msra.mxu0 %v983
    %v985 = vand.u32 %v230, 4294901760
    %986 = vmatpush.msra.mxu0 %v985
    %v987 = vand.u32 %v214, 4294901760
    %988 = vmatmul.f32.gmra.mxu0 %v987
    %v989 = vpop.f32.mrf.mxu0
    %v990 = vadd.f32 %v893, %v989
    %v991 = vand.u32 %v215, 4294901760
    %992 = vmatmul.f32.gmra.mxu0 %v991
    %v993 = vpop.f32.mrf.mxu0
    %v994 = vadd.f32 %v897, %v993
    %v995 = vand.u32 %v216, 4294901760
    %996 = vmatmul.f32.gmra.mxu0 %v995
    %v997 = vpop.f32.mrf.mxu0
    %v998 = vadd.f32 %v901, %v997
    %v999 = vand.u32 %v217, 4294901760
    %1000 = vmatmul.f32.gmra.mxu0 %v999
    %v1001 = vpop.f32.mrf.mxu0
    %v1002 = vadd.f32 %v905, %v1001
    %v1003 = vand.u32 %v218, 4294901760
    %1004 = vmatmul.f32.gmra.mxu0 %v1003
    %v1005 = vpop.f32.mrf.mxu0
    %v1006 = vadd.f32 %v909, %v1005
    %v1007 = vand.u32 %v219, 4294901760
    %1008 = vmatmul.f32.gmra.mxu0 %v1007
    %v1009 = vpop.f32.mrf.mxu0
    %v1010 = vadd.f32 %v913, %v1009
    %v1011 = vand.u32 %v220, 4294901760
    %1012 = vmatmul.f32.gmra.mxu0 %v1011
    %v1013 = vpop.f32.mrf.mxu0
    %v1014 = vadd.f32 %v917, %v1013
    %v1015 = vand.u32 %v221, 4294901760
    %1016 = vmatmul.f32.gmra.mxu0 %v1015
    %v1017 = vpop.f32.mrf.mxu0
    %v1018 = vadd.f32 %v921, %v1017
    %v1019 = vand.u32 %v222, 4294901760
    %1020 = vmatmul.f32.gmra.mxu0 %v1019
    %v1021 = vpop.f32.mrf.mxu0
    %v1022 = vadd.f32 %v925, %v1021
    %v1023 = vand.u32 %v223, 4294901760
    %1024 = vmatmul.f32.gmra.mxu0 %v1023
    %v1025 = vpop.f32.mrf.mxu0
    %v1026 = vadd.f32 %v929, %v1025
    %v1027 = vand.u32 %v224, 4294901760
    %1028 = vmatmul.f32.gmra.mxu0 %v1027
    %v1029 = vpop.f32.mrf.mxu0
    %v1030 = vadd.f32 %v933, %v1029
    %v1031 = vand.u32 %v225, 4294901760
    %1032 = vmatmul.f32.gmra.mxu0 %v1031
    %v1033 = vpop.f32.mrf.mxu0
    %v1034 = vadd.f32 %v937, %v1033
    %v1035 = vand.u32 %v226, 4294901760
    %1036 = vmatmul.f32.gmra.mxu0 %v1035
    %v1037 = vpop.f32.mrf.mxu0
    %v1038 = vadd.f32 %v941, %v1037
    %v1039 = vand.u32 %v227, 4294901760
    %1040 = vmatmul.f32.gmra.mxu0 %v1039
    %v1041 = vpop.f32.mrf.mxu0
    %v1042 = vadd.f32 %v945, %v1041
    %v1043 = vand.u32 %v228, 4294901760
    %1044 = vmatmul.f32.gmra.mxu0 %v1043
    %v1045 = vpop.f32.mrf.mxu0
    %v1046 = vadd.f32 %v949, %v1045
    %v1047 = vand.u32 %v229, 4294901760
    %1048 = vmatmul.f32.gmra.mxu0 %v1047
    %v1049 = vpop.f32.mrf.mxu0
    %v1050 = vadd.f32 %v953, %v1049
    %1051 = vdwg.mxu0
    %1052 = vst [vmem:[#allocation8] sm:$0xff] %v990
    %1053 = vst [vmem:[#allocation8 + $0x8] sm:$0xff] %v994
    %1054 = vst [vmem:[#allocation8 + $0x10] sm:$0xff] %v998
    %1055 = vst [vmem:[#allocation8 + $0x18] sm:$0xff] %v1002
    %1056 = vst [vmem:[#allocation8 + $0x20] sm:$0xff] %v1006
    %1057 = vst [vmem:[#allocation8 + $0x28] sm:$0xff] %v1010
    %1058 = vst [vmem:[#allocation8 + $0x30] sm:$0xff] %v1014
    %1059 = vst [vmem:[#allocation8 + $0x38] sm:$0xff] %v1018
    %1060 = vst [vmem:[#allocation8 + $0x40] sm:$0xff] %v1022
    %1061 = vst [vmem:[#allocation8 + $0x48] sm:$0xff] %v1026
    %1062 = vst [vmem:[#allocation8 + $0x50] sm:$0xff] %v1030
    %1063 = vst [vmem:[#allocation8 + $0x58] sm:$0xff] %v1034
    %1064 = vst [vmem:[#allocation8 + $0x60] sm:$0xff] %v1038
    %1065 = vst [vmem:[#allocation8 + $0x68] sm:$0xff] %v1042
    %1066 = vst [vmem:[#allocation8 + $0x70] sm:$0xff] %v1046
    %1067 = vst [vmem:[#allocation8 + $0x78] sm:$0xff] %v1050
    // Predicated region
    $region26: #{tpu_custom_call.1} parent=1 // pred_check
      _
    $region27: #{tpu_custom_call.1} parent=1 // pred_check_branch
      %1069 = sbr.rel (0) target = $region29
    $region28: #{tpu_custom_call.1} parent=1 // pred_region
      %1071 = vsyncadd [#allocation4], 0
      %s1072 = sshll.u32 [#allocation8], 4
      %s1073 = int_to_ptr.vmem [resolvable:$true] %s1072
      %s1074 = sshll.u32 %s3, 4
      %s1075 = int_to_ptr.hbm [resolvable:$true] %s1074
      %1080 = dma.vmem_to_hbm [thread:$0]  %s1073, 2048, %s1075, [#allocation4], 128, 128, 8
    $region29: #{tpu_custom_call.1} parent=1 // pred_fallthru
      _
    // Predicated region
    $region30: #{tpu_custom_call.1} parent=1 // pred_check
      _
    $region31: #{tpu_custom_call.1} parent=1 // pred_check_branch
      %1082 = sbr.rel (0) target = $region33
    $region32: #{tpu_custom_call.1} parent=1 // pred_region
      %1084 = dma.done [#allocation4], 2048
    $region33: #{tpu_custom_call.1} parent=1 // pred_fallthru
      _
    %1085 = vsyncpa [#allocation3], 1
    %1086 = vsyncpa [#allocation6], 1
    %1087 = vsyncpa [#allocation4], 1

</llo_original>
